<compile_context>
chip_gen: v5e
topology: v5e:2x2
jax: 0.10.0
libtpu: 0.0.40
codegen_flags: <defaults>
</compile_context>

<pallas_src>
import functools

import jax
import jax.numpy as jnp
from jax.experimental import pallas as pl
from jax.experimental.pallas import tpu as pltpu


def _round_up(x: int, m: int) -> int:
    return (x + m - 1) // m * m


def _matmul_bias_kernel(x_ref, wt_ref, b_ref, o_ref, acc_ref):
    """One (tm, tn) output tile; grid axis 2 walks the K reduction.

    The bias row (zeros when bias is absent / skipped) initializes the f32
    accumulator at k==0, so no epilogue add is needed.
    """
    k = pl.program_id(2)

    @pl.when(k == 0)
    def _():
        acc_ref[...] = jnp.broadcast_to(
            b_ref[...].astype(jnp.float32), acc_ref.shape
        )

    acc_ref[...] += jnp.dot(
        x_ref[...], wt_ref[...], preferred_element_type=jnp.float32
    )

    @pl.when(k == pl.num_programs(2) - 1)
    def _():
        o_ref[...] = acc_ref[...].astype(o_ref.dtype)


@functools.partial(jax.jit, static_argnames=("tm", "tn", "tk"))
def _linear_pallas(x2d, weight_t, bias2d, *, tm, tn, tk):
    """x2d: (M, K); weight_t: (K, N) pre-transposed; bias2d: (1, N). -> (M, N).

    All dimensions are already padded to tile multiples by the caller.
    """
    M, K = x2d.shape
    Kw, N = weight_t.shape
    assert K == Kw
    assert M % tm == 0 and N % tn == 0 and K % tk == 0

    grid = (M // tm, N // tn, K // tk)

    bytes_x = x2d.dtype.itemsize
    bytes_w = weight_t.dtype.itemsize
    bytes_b = bias2d.dtype.itemsize
    bytes_o = x2d.dtype.itemsize

    cost = pl.CostEstimate(
        flops=2 * M * N * K,
        transcendentals=0,
        bytes_accessed=M * K * bytes_x + K * N * bytes_w + M * N * bytes_o
        + N * bytes_b,
    )

    # Double-buffered inputs + double-buffered output + resident f32 accumulator.
    vmem_footprint = (
        2 * (tm * tk * bytes_x + tk * tn * bytes_w + tn * bytes_b)
        + 2 * tm * tn * bytes_o
        + tm * tn * 4
    )
    # Leave headroom; cap well below v7x's 64 MiB physical VMEM.
    vmem_limit = int(min(48 * 1024 * 1024, max(32 * 1024 * 1024, 2 * vmem_footprint)))

    return pl.pallas_call(
        _matmul_bias_kernel,
        out_shape=jax.ShapeDtypeStruct((M, N), x2d.dtype),
        grid_spec=pltpu.PrefetchScalarGridSpec(
            num_scalar_prefetch=0,
            grid=grid,
            in_specs=[
                pl.BlockSpec((tm, tk), lambda i, j, k: (i, k)),
                pl.BlockSpec((tk, tn), lambda i, j, k: (k, j)),
                pl.BlockSpec((1, tn), lambda i, j, k: (0, j)),
            ],
            out_specs=pl.BlockSpec((tm, tn), lambda i, j, k: (i, j)),
            scratch_shapes=[pltpu.VMEM((tm, tn), jnp.float32)],
        ),
        compiler_params=pltpu.CompilerParams(
            dimension_semantics=("parallel", "parallel", "arbitrary"),
            vmem_limit_bytes=vmem_limit,
        ),
        cost_estimate=cost,
    )(x2d, weight_t, bias2d)


class RowParallelLinear:
    """JAX/Pallas port of vLLM's RowParallelLinear (tp_size == 1).

    Y = X @ A + b, where A is the (input_size, output_size) logical weight,
    stored PyTorch-style as `weight` of shape (output_size, input_size).
    """

    # Tile caps (multiples of the (8, 128) native tiling). Large enough to
    # amortize the ~0.35 us per-grid-step overhead and feed the 256-wide MXU
    # on v6e/v7x, small enough that double-buffered f32 tiles stay far under
    # every generation's scoped-VMEM budget.
    _TM_MAX = 256
    _TN_MAX = 512
    _TK_MAX = 512

    def __init__(
        self,
        input_size: int,
        output_size: int,
        bias: bool = True,
        input_is_parallel: bool = True,
        skip_bias_add: bool = False,
        params_dtype=jnp.float32,
        reduce_results: bool = True,
        *,
        key,
    ):
        self.input_size = input_size
        self.output_size = output_size
        self.input_is_parallel = input_is_parallel
        self.skip_bias_add = skip_bias_add
        self.reduce_results = reduce_results
        self.params_dtype = params_dtype
        self.tp_size = 1  # single TPU core; no tensor-parallel all-reduce needed
        self.input_size_per_partition = input_size // self.tp_size
        # TODO(synk): tensor_model_parallel_all_reduce is a no-op at tp_size=1;
        # multi-chip reduce would need pltpu.make_async_remote_copy + semaphores.

        if not reduce_results and bias and not skip_bias_add:
            raise ValueError(
                "When not reduce the results, adding bias to the results can "
                "lead to incorrect results"
            )

        K = self.input_size_per_partition
        N = self.output_size

        # Tile sizes along N and K are fixed at init (weight/bias are padded once).
        self.tn = min(self._TN_MAX, _round_up(N, 128))
        self.tk = min(self._TK_MAX, _round_up(K, 128))
        self.n_pad = _round_up(N, self.tn)
        self.k_pad = _round_up(K, self.tk)

        kw, kb = jax.random.split(key)
        # Deterministic synthetic init (vLLM uses torch.empty + loader).
        self.weight = (
            jax.random.normal(kw, (N, K), dtype=jnp.float32) * 0.02
        ).astype(params_dtype)
        if bias:
            self.bias = (
                jax.random.normal(kb, (N,), dtype=jnp.float32) * 0.02
            ).astype(params_dtype)
        else:
            self.bias = None

        # Pre-transpose + pad the weight ONCE: (K_pad, N_pad), lane-dense tiles,
        # no per-call HBM transpose.
        wt = self.weight.T  # (K, N)
        self.weight_t = jnp.pad(wt, ((0, self.k_pad - K), (0, self.n_pad - N)))

        # Bias row fed to the kernel (zeros when absent or when skip_bias_add).
        if (self.bias is not None) and (not skip_bias_add):
            self._kernel_bias = jnp.pad(self.bias, (0, self.n_pad - N)).reshape(
                1, self.n_pad
            )
        else:
            self._kernel_bias = jnp.zeros((1, self.n_pad), dtype=params_dtype)

    def __call__(self, x):
        # x: [..., input_size_per_partition]
        orig_shape = x.shape
        K = orig_shape[-1]
        assert K == self.input_size_per_partition
        M = 1
        for d in orig_shape[:-1]:
            M *= d
        N = self.output_size

        x2d = x.reshape(M, K)

        # Tile along M chosen per call; pad M/K so every block is (8,128)-legal.
        tm = min(self._TM_MAX, _round_up(M, 8))
        m_pad = _round_up(M, tm)
        if m_pad != M or self.k_pad != K:
            x2d = jnp.pad(x2d, ((0, m_pad - M), (0, self.k_pad - K)))

        out2d = _linear_pallas(
            x2d, self.weight_t, self._kernel_bias, tm=tm, tn=self.tn, tk=self.tk
        )
        out2d = out2d[:M, :N]
        output = out2d.reshape(*orig_shape[:-1], N)
        output_bias = self.bias if self.skip_bias_add else None
        return output, output_bias


if __name__ == "__main__":
    key = jax.random.PRNGKey(0)
    k_in, k_layer, k_in2, k_layer2 = jax.random.split(key, 4)

    # Case 1: aligned shapes, fused bias.
    batch, seq = 2, 8
    input_size, output_size = 256, 128
    layer = RowParallelLinear(
        input_size=input_size, output_size=output_size, bias=True, key=k_layer
    )
    x = jax.random.normal(k_in, (batch, seq, input_size), dtype=jnp.float32)
    out, out_bias = layer(x)
    out = jax.block_until_ready(out)
    ref = jnp.einsum("bsk,nk->bsn", x, layer.weight) + layer.bias
    assert out.shape == (batch, seq, output_size)
    assert out_bias is None
    assert jnp.allclose(out, ref, atol=1e-4, rtol=1e-4), "mismatch vs reference"

    # Case 2: non-multiple-of-128 shapes (exercises the padding path) +
    # skip_bias_add=True (bias returned, not added).
    layer2 = RowParallelLinear(
        input_size=200, output_size=100, bias=True, skip_bias_add=True, key=k_layer2
    )
    x2 = jax.random.normal(k_in2, (3, 5, 200), dtype=jnp.float32)
    out2, out_bias2 = layer2(x2)
    out2 = jax.block_until_ready(out2)
    ref2 = jnp.einsum("bsk,nk->bsn", x2, layer2.weight)
    assert out2.shape == (3, 5, 100)
    assert out_bias2 is not None and out_bias2.shape == (100,)
    assert jnp.allclose(out2, ref2, atol=1e-4, rtol=1e-4), "mismatch vs reference (padded)"

    print("KERNEL_OK")
</pallas_src>

<mosaic_0001>
module attributes {stable_mosaic.version = 11 : i64} {
  func.func @_matmul_bias_kernel(%arg0: i32, %arg1: i32, %arg2: i32, %arg3: memref<16x256xf32, #tpu.memory_space<vmem>>, %arg4: memref<256x128xf32, #tpu.memory_space<vmem>>, %arg5: memref<1x128xf32, #tpu.memory_space<vmem>>, %arg6: memref<16x128xf32, #tpu.memory_space<vmem>>, %arg7: memref<16x128xf32, #tpu.memory_space<vmem>>) attributes {dimension_semantics = [#tpu.dimension_semantics<parallel>, #tpu.dimension_semantics<parallel>, #tpu.dimension_semantics<arbitrary>], iteration_bounds = array<i64: 1, 1, 1>, scalar_prefetch = 0 : i64, scratch_operands = 1 : i64, tpu.core_type = #tpu.core_type<tc>, window_params = [{transform_indices = @transform_0, window_bounds = array<i64: 16, 256>}, {transform_indices = @transform_1, window_bounds = array<i64: 256, 128>}, {transform_indices = @transform_2, window_bounds = array<i64: 1, 128>}, {transform_indices = @transform_3, window_bounds = array<i64: 16, 128>}]} {
    %c0_i32 = arith.constant 0 : i32
    %0 = arith.cmpi eq, %arg2, %c0_i32 : i32
    %1 = arith.extui %0 : i1 to i32
    %c0_i32_0 = arith.constant 0 : i32
    %2 = arith.cmpi ne, %1, %c0_i32_0 : i32
    scf.if %2 {
      %c0_10 = arith.constant 0 : index
      %c0_11 = arith.constant 0 : index
      %12 = vector.load %arg5[%c0_10, %c0_11] : memref<1x128xf32, #tpu.memory_space<vmem>>, vector<1x128xf32>
      %13 = vector.shape_cast %12 : vector<1x128xf32> to vector<1x128xf32>
      %14 = vector.broadcast %13 : vector<1x128xf32> to vector<16x128xf32>
      %c0_12 = arith.constant 0 : index
      %c0_13 = arith.constant 0 : index
      %15 = vector.load %arg7[%c0_12, %c0_13] : memref<16x128xf32, #tpu.memory_space<vmem>>, vector<16x128xf32>
      tpu.vector_store %arg7[%c0_12, %c0_13], %14 {strides = array<i32>} : memref<16x128xf32, #tpu.memory_space<vmem>>, vector<16x128xf32>,
    } else {
    }
    %c0 = arith.constant 0 : index
    %c0_1 = arith.constant 0 : index
    %3 = vector.load %arg7[%c0, %c0_1] : memref<16x128xf32, #tpu.memory_space<vmem>>, vector<16x128xf32>
    %c0_2 = arith.constant 0 : index
    %c0_3 = arith.constant 0 : index
    %4 = vector.load %arg3[%c0_2, %c0_3] : memref<16x256xf32, #tpu.memory_space<vmem>>, vector<16x256xf32>
    %c0_4 = arith.constant 0 : index
    %c0_5 = arith.constant 0 : index
    %5 = vector.load %arg4[%c0_4, %c0_5] : memref<256x128xf32, #tpu.memory_space<vmem>>, vector<256x128xf32>
    %cst = arith.constant dense<0.000000e+00> : vector<16x128xf32>
    %6 = tpu.matmul %4, %5, %cst {dimension_numbers = #tpu.dot_dimension_numbers<[1], [0], [0], [1], [0, 0, 1, 1], [], []>} : vector<16x256xf32>, vector<256x128xf32>, vector<16x128xf32> -> vector<16x128xf32>
    %7 = arith.addf %3, %6 : vector<16x128xf32>
    %c0_6 = arith.constant 0 : index
    %c0_7 = arith.constant 0 : index
    %8 = vector.load %arg7[%c0_6, %c0_7] : memref<16x128xf32, #tpu.memory_space<vmem>>, vector<16x128xf32>
    tpu.vector_store %arg7[%c0_6, %c0_7], %7 {strides = array<i32>} : memref<16x128xf32, #tpu.memory_space<vmem>>, vector<16x128xf32>,
    %c0_i32_8 = arith.constant 0 : i32
    %9 = arith.cmpi eq, %arg2, %c0_i32_8 : i32
    %10 = arith.extui %9 : i1 to i32
    %c0_i32_9 = arith.constant 0 : i32
    %11 = arith.cmpi ne, %10, %c0_i32_9 : i32
    scf.if %11 {
      %c0_10 = arith.constant 0 : index
      %c0_11 = arith.constant 0 : index
      %12 = vector.load %arg7[%c0_10, %c0_11] : memref<16x128xf32, #tpu.memory_space<vmem>>, vector<16x128xf32>
      %c0_12 = arith.constant 0 : index
      %c0_13 = arith.constant 0 : index
      %13 = vector.load %arg6[%c0_12, %c0_13] : memref<16x128xf32, #tpu.memory_space<vmem>>, vector<16x128xf32>
      tpu.vector_store %arg6[%c0_12, %c0_13], %12 {strides = array<i32>} : memref<16x128xf32, #tpu.memory_space<vmem>>, vector<16x128xf32>,
    } else {
    }
    return
  }
  func.func @transform_0(%arg0: i32, %arg1: i32, %arg2: i32) -> (i32, i32) {
    %c0_i32 = arith.constant 0 : i32
    return %arg0, %arg2 : i32, i32
  }
  func.func @transform_1(%arg0: i32, %arg1: i32, %arg2: i32) -> (i32, i32) {
    %c0_i32 = arith.constant 0 : i32
    return %arg2, %arg1 : i32, i32
  }
  func.func @transform_2(%arg0: i32, %arg1: i32, %arg2: i32) -> (i32, i32) {
    %c0_i32 = arith.constant 0 : i32
    %c0_i32_0 = arith.constant 0 : i32
    return %c0_i32, %arg1 : i32, i32
  }
  func.func @transform_3(%arg0: i32, %arg1: i32, %arg2: i32) -> (i32, i32) {
    %c0_i32 = arith.constant 0 : i32
    return %arg0, %arg1 : i32, i32
  }
}

</mosaic_0001>

<llo_original>
// kernel: _linear_pallas.1
$region0: #{_linear_pallas.1}
  #allocation0 [shape = 'u32[]', space=smem, size = 0x4, offset = 0x4, fixed_abs, tag = 'smem constant byte address 0x4 - core index']
  #allocation1 [shape = 'u32[72,128]{1,0:T(1,128)}', space=vmem, size = 0x9000, scoped, tag = 'internal scratch']
  #allocation2 [shape = 'f32[16,128]{1,0:T(8,128)}', space=vmem, size = 0x2000, scoped, tag = 'scratch operand']
  %s0 = inlined_call_operand.hbm [shape: f32[16,256], index: 0, kind: input, shape index: {}]
  %s1 = inlined_call_operand.hbm [shape: f32[256,128], index: 1, kind: input, shape index: {}]
  %s2 = inlined_call_operand.vmem [shape: f32[1,128], index: 2, kind: input, shape index: {}]
  %s3 = inlined_call_operand.hbm [shape: f32[16,128], index: 3, kind: output, shape index: {}]
  %s4 = sld [smem:[#allocation0]]
  $region38: #{_linear_pallas.1} parent=0
    _
  %s6 = ssub.s32 1, %s4
  %s7 = scalar_select 0, %s6, %s4
  $region1: #{_linear_pallas.1} parent=0
    #allocation3 [shape = 'u8[16384]{0}', space=vmem, size = 0x4000, scoped, tag = 'input window, operand 0, single buffered']
    #allocation4 [shape = 's32[1]{0}', space=sflag, size = 0x4, scoped, tag = 'scoped memory for _linear_pallas.1']
    #allocation5 [shape = 's32[1]{0}', space=sflag, size = 0x4, scoped, tag = 'scoped memory for _linear_pallas.1']
    #allocation6 [shape = 'u8[131072]{0}', space=vmem, size = 0x20000, scoped, tag = 'input window, operand 1, single buffered']
    #allocation7 [shape = 's32[1]{0}', space=sflag, size = 0x4, scoped, tag = 'scoped memory for _linear_pallas.1']
    #allocation8 [shape = 'u8[8192]{0}', space=vmem, size = 0x2000, scoped, tag = 'output window, operand 0, single buffered']
    %8 = vsyncpa [#allocation4], 0
    %9 = vsyncpa [#allocation7], 0
    %10 = vsyncpa [#allocation5], 0
    // Predicated region
    $region2: #{_linear_pallas.1} parent=1 // pred_check
      _
    $region3: #{_linear_pallas.1} parent=1 // pred_check_branch
      %12 = sbr.rel (0) target = $region5
    $region4: #{_linear_pallas.1} parent=1 // pred_region
      %14 = vsyncadd [#allocation4], 0
      %s15 = sshll.u32 %s0, 4
      %s16 = int_to_ptr.hbm [resolvable:$true] %s15
      %s17 = sshll.u32 [#allocation3], 4
      %s18 = int_to_ptr.vmem [resolvable:$true] %s17
      %23 = dma.hbm_to_vmem [thread:$0]  %s16, 512, %s18, [#allocation4], 256, 256, 16
    $region5: #{_linear_pallas.1} parent=1 // pred_fallthru
      _
    // Predicated region
    $region6: #{_linear_pallas.1} parent=1 // pred_check
      _
    $region7: #{_linear_pallas.1} parent=1 // pred_check_branch
      %25 = sbr.rel (0) target = $region9
    $region8: #{_linear_pallas.1} parent=1 // pred_region
      %27 = vsyncadd [#allocation7], 0
      %s28 = sshll.u32 %s1, 4
      %s29 = int_to_ptr.hbm [resolvable:$true] %s28
      %s30 = sshll.u32 [#allocation6], 4
      %s31 = int_to_ptr.vmem [resolvable:$true] %s30
      %36 = dma.hbm_to_vmem [thread:$0]  %s29, 4096, %s31, [#allocation7], 128, 128, 8
    $region9: #{_linear_pallas.1} parent=1 // pred_fallthru
      _
    // Predicated region
    $region10: #{_linear_pallas.1} parent=1 // pred_check
      _
    $region11: #{_linear_pallas.1} parent=1 // pred_check_branch
      %38 = sbr.rel (0) target = $region13
    $region12: #{_linear_pallas.1} parent=1 // pred_region
      _
    $region13: #{_linear_pallas.1} parent=1 // pred_fallthru
      _
    // Predicated region
    $region14: #{_linear_pallas.1} parent=1 // pred_check
      _
    $region15: #{_linear_pallas.1} parent=1 // pred_check_branch
      %40 = sbr.rel (0) target = $region17
    $region16: #{_linear_pallas.1} parent=1 // pred_region
      %42 = dma.done [#allocation4], 512
    $region17: #{_linear_pallas.1} parent=1 // pred_fallthru
      _
    // Predicated region
    $region18: #{_linear_pallas.1} parent=1 // pred_check
      _
    $region19: #{_linear_pallas.1} parent=1 // pred_check_branch
      %44 = sbr.rel (0) target = $region21
    $region20: #{_linear_pallas.1} parent=1 // pred_region
      %46 = dma.done [#allocation7], 4096
    $region21: #{_linear_pallas.1} parent=1 // pred_fallthru
      _
    %p47 = scmp.eq.s32.totalorder 0, 0
    // Predicated region
    $region22: #{_linear_pallas.1} parent=1 // pred_check
      %p48 = pneg %p47
    $region23: #{_linear_pallas.1} parent=1 // pred_check_branch
      %50 = sbr.rel (%p48) target = $region25
    $region24: #{_linear_pallas.1} parent=1 // pred_region
      %v51 = vld [vmem:[%s2] sm:$0x1]
      %v53 = vperm.slane %v51, 0
      %55 = vst [vmem:[#allocation2] sm:$0xff] %v53
      %56 = vst [vmem:[#allocation2 + $0x8] sm:$0xff] %v53
    $region25: #{_linear_pallas.1} parent=1 // pred_fallthru
      _
    %v57 = vld [vmem:[#allocation2] sm:$0xff]
    %v58 = vld [vmem:[#allocation2 + $0x8] sm:$0xff]
    %v59 = vld [vmem:[#allocation3] sm:$0xff]
    %v60 = vld [vmem:[#allocation3 + $0x8] sm:$0xff]
    %v61 = vld [vmem:[#allocation3 + $0x10] sm:$0xff]
    %v62 = vld [vmem:[#allocation3 + $0x18] sm:$0xff]
    %v63 = vld [vmem:[#allocation6] sm:$0xff]
    %v64 = vld [vmem:[#allocation6 + $0x8] sm:$0xff]
    %v65 = vld [vmem:[#allocation6 + $0x10] sm:$0xff]
    %v66 = vld [vmem:[#allocation6 + $0x18] sm:$0xff]
    %v67 = vld [vmem:[#allocation6 + $0x20] sm:$0xff]
    %v68 = vld [vmem:[#allocation6 + $0x28] sm:$0xff]
    %v69 = vld [vmem:[#allocation6 + $0x30] sm:$0xff]
    %v70 = vld [vmem:[#allocation6 + $0x38] sm:$0xff]
    %v71 = vld [vmem:[#allocation6 + $0x40] sm:$0xff]
    %v72 = vld [vmem:[#allocation6 + $0x48] sm:$0xff]
    %v73 = vld [vmem:[#allocation6 + $0x50] sm:$0xff]
    %v74 = vld [vmem:[#allocation6 + $0x58] sm:$0xff]
    %v75 = vld [vmem:[#allocation6 + $0x60] sm:$0xff]
    %v76 = vld [vmem:[#allocation6 + $0x68] sm:$0xff]
    %v77 = vld [vmem:[#allocation6 + $0x70] sm:$0xff]
    %v78 = vld [vmem:[#allocation6 + $0x78] sm:$0xff]
    %v79 = vld [vmem:[#allocation6 + $0x80] sm:$0xff]
    %v80 = vld [vmem:[#allocation6 + $0x88] sm:$0xff]
    %v81 = vld [vmem:[#allocation6 + $0x90] sm:$0xff]
    %v82 = vld [vmem:[#allocation6 + $0x98] sm:$0xff]
    %v83 = vld [vmem:[#allocation6 + $0xa0] sm:$0xff]
    %v84 = vld [vmem:[#allocation6 + $0xa8] sm:$0xff]
    %v85 = vld [vmem:[#allocation6 + $0xb0] sm:$0xff]
    %v86 = vld [vmem:[#allocation6 + $0xb8] sm:$0xff]
    %v87 = vld [vmem:[#allocation6 + $0xc0] sm:$0xff]
    %v88 = vld [vmem:[#allocation6 + $0xc8] sm:$0xff]
    %v89 = vld [vmem:[#allocation6 + $0xd0] sm:$0xff]
    %v90 = vld [vmem:[#allocation6 + $0xd8] sm:$0xff]
    %v91 = vld [vmem:[#allocation6 + $0xe0] sm:$0xff]
    %v92 = vld [vmem:[#allocation6 + $0xe8] sm:$0xff]
    %v93 = vld [vmem:[#allocation6 + $0xf0] sm:$0xff]
    %v94 = vld [vmem:[#allocation6 + $0xf8] sm:$0xff]
    %95 = vmatpush.msra.mxu0 %v78
    %96 = vmatpush.msra.mxu0 %v77
    %97 = vmatpush.msra.mxu0 %v76
    %98 = vmatpush.msra.mxu0 %v75
    %99 = vmatpush.msra.mxu0 %v74
    %100 = vmatpush.msra.mxu0 %v73
    %101 = vmatpush.msra.mxu0 %v72
    %102 = vmatpush.msra.mxu0 %v71
    %103 = vmatpush.msra.mxu0 %v70
    %104 = vmatpush.msra.mxu0 %v69
    %105 = vmatpush.msra.mxu0 %v68
    %106 = vmatpush.msra.mxu0 %v67
    %107 = vmatpush.msra.mxu0 %v66
    %108 = vmatpush.msra.mxu0 %v65
    %109 = vmatpush.msra.mxu0 %v64
    %110 = vmatpush.msra.mxu0 %v63
    %111 = vmatmul.f32.gmra.mxu0 %v59
    %v112 = vpop.f32.mrf.mxu0
    %v113 = vadd.f32 0.0, %v112
    %114 = vmatmul.f32.gmra.mxu0 %v61
    %v115 = vpop.f32.mrf.mxu0
    %v116 = vadd.f32 0.0, %v115
    %117 = vdwg.mxu0
    %118 = vmatpush.msra.mxu0 %v94
    %119 = vmatpush.msra.mxu0 %v93
    %120 = vmatpush.msra.mxu0 %v92
    %121 = vmatpush.msra.mxu0 %v91
    %122 = vmatpush.msra.mxu0 %v90
    %123 = vmatpush.msra.mxu0 %v89
    %124 = vmatpush.msra.mxu0 %v88
    %125 = vmatpush.msra.mxu0 %v87
    %126 = vmatpush.msra.mxu0 %v86
    %127 = vmatpush.msra.mxu0 %v85
    %128 = vmatpush.msra.mxu0 %v84
    %129 = vmatpush.msra.mxu0 %v83
    %130 = vmatpush.msra.mxu0 %v82
    %131 = vmatpush.msra.mxu0 %v81
    %132 = vmatpush.msra.mxu0 %v80
    %133 = vmatpush.msra.mxu0 %v79
    %134 = vmatmul.f32.gmra.mxu0 %v60
    %v135 = vpop.f32.mrf.mxu0
    %v136 = vadd.f32 %v113, %v135
    %137 = vmatmul.f32.gmra.mxu0 %v62
    %v138 = vpop.f32.mrf.mxu0
    %v139 = vadd.f32 %v116, %v138
    %140 = vdwg.mxu0
    %v141 = vadd.f32 %v57, %v136
    %v142 = vadd.f32 %v58, %v139
    %143 = vst [vmem:[#allocation2] sm:$0xff] %v141
    %144 = vst [vmem:[#allocation2 + $0x8] sm:$0xff] %v142
    // Predicated region
    $region26: #{_linear_pallas.1} parent=1 // pred_check
      %p145 = pneg %p47
    $region27: #{_linear_pallas.1} parent=1 // pred_check_branch
      %147 = sbr.rel (%p145) target = $region29
    $region28: #{_linear_pallas.1} parent=1 // pred_region
      %v148 = vld [vmem:[#allocation2] sm:$0xff]
      %v149 = vld [vmem:[#allocation2 + $0x8] sm:$0xff]
      %150 = vst [vmem:[#allocation8] sm:$0xff] %v148
      %151 = vst [vmem:[#allocation8 + $0x8] sm:$0xff] %v149
    $region29: #{_linear_pallas.1} parent=1 // pred_fallthru
      _
    // Predicated region
    $region30: #{_linear_pallas.1} parent=1 // pred_check
      _
    $region31: #{_linear_pallas.1} parent=1 // pred_check_branch
      %153 = sbr.rel (0) target = $region33
    $region32: #{_linear_pallas.1} parent=1 // pred_region
      %155 = vsyncadd [#allocation5], 0
      %s156 = sshll.u32 [#allocation8], 4
      %s157 = int_to_ptr.vmem [resolvable:$true] %s156
      %s158 = sshll.u32 %s3, 4
      %s159 = int_to_ptr.hbm [resolvable:$true] %s158
      %164 = dma.vmem_to_hbm [thread:$0]  %s157, 256, %s159, [#allocation5], 128, 128, 8
    $region33: #{_linear_pallas.1} parent=1 // pred_fallthru
      _
    // Predicated region
    $region34: #{_linear_pallas.1} parent=1 // pred_check
      _
    $region35: #{_linear_pallas.1} parent=1 // pred_check_branch
      %166 = sbr.rel (0) target = $region37
    $region36: #{_linear_pallas.1} parent=1 // pred_region
      %168 = dma.done [#allocation5], 256
    $region37: #{_linear_pallas.1} parent=1 // pred_fallthru
      _
    %169 = vsyncpa [#allocation4], 1
    %170 = vsyncpa [#allocation7], 1
    %171 = vsyncpa [#allocation5], 1

</llo_original>
